<compile_context>
chip_gen: v7x
topology: tpu7x:2x2x1
jax: 0.10.0
libtpu: 0.0.40
codegen_flags: <defaults>
</compile_context>

<pallas_src>
import numpy as np

import jax
import jax.numpy as jnp
from jax.experimental import pallas as pl
from jax.experimental.pallas import tpu as pltpu


# ---------------------------------------------------------------------------
# Operator-matrix construction (trace-time, numpy).
# ---------------------------------------------------------------------------
def _bilinear_up2_matrix(n: int) -> np.ndarray:
    """(2n, n) matrix of nn.Upsample(scale_factor=2, bilinear, align_corners=False)."""
    m = np.zeros((2 * n, n), dtype=np.float64)
    for o in range(2 * n):
        src = (o + 0.5) / 2.0 - 0.5
        src = max(src, 0.0)                       # PyTorch clamps negative src to 0
        i0 = min(int(np.floor(src)), n - 1)
        i1 = min(i0 + 1, n - 1)
        w1 = src - i0
        m[o, i0] += 1.0 - w1
        m[o, i1] += w1
    return m


def _smooth1d_matrix(n: int) -> np.ndarray:
    """(n, n) matrix of ReplicationPad(1) + conv [1,2,1]/4 along one axis."""
    s = np.zeros((n, n), dtype=np.float64)
    for i in range(n):
        s[i, max(i - 1, 0)] += 0.25
        s[i, i] += 0.5
        s[i, min(i + 1, n - 1)] += 0.25
    return s


# ---------------------------------------------------------------------------
# Kernel.
# ---------------------------------------------------------------------------
def _upsample_smooth_kernel(x_ref, mh_ref, mwt_ref, o_ref):
    # x_ref:   (tc, H, W)     channel-block tile
    # mh_ref:  (2H, H)        combined smooth@up along H (left operand)
    # mwt_ref: (W, 2W)        combined smooth@up along W, pre-transposed (K x N)
    # o_ref:   (tc, 2H, 2W)
    tc, h, w = x_ref.shape
    h2 = mh_ref.shape[0]
    w2 = mwt_ref.shape[1]

    x = x_ref[...]                                   # native dtype -> MXU
    # --- W direction: (tc, H, W) @ (W, 2W) -> (tc, H, 2W), canonical batched matmul.
    mwt_b = jnp.broadcast_to(mwt_ref[...], (tc, w, w2))
    t = jnp.einsum('bhw,bwq->bhq', x, mwt_b,
                   preferred_element_type=jnp.float32).astype(x.dtype)
    # --- H direction: (tc, 2H, H) @ (tc, H, 2W) -> (tc, 2H, 2W), canonical batched matmul.
    mh_b = jnp.broadcast_to(mh_ref[...], (tc, h2, h))
    y = jnp.einsum('bph,bhq->bpq', mh_b, t,
                   preferred_element_type=jnp.float32)
    o_ref[...] = y.astype(o_ref.dtype)


def _pick_tile_c(bc: int, h: int, w: int, itemsize: int) -> int:
    """Largest channel-block that (a) keeps double-buffered in+out tiles within a
    modest VMEM budget, (b) leaves >=2 grid steps when possible (v7x megacore),
    and (c) divides B*C exactly."""
    per_c = 2 * (h * w + 4 * h * w) * itemsize       # double-buffered in + out per channel
    budget = 8 * 1024 * 1024
    t = max(1, min(bc, budget // max(per_c, 1)))
    if bc >= 2:
        t = min(t, max(bc // 2, 1))
    while bc % t:
        t -= 1
    return int(t)


def upsample_smooth(x, *, tile_c=None):
    """x: (B, C, H, W) -> (B, C, 2H, 2W). Matches UpSample().forward(x)."""
    B, C, H, W = x.shape
    BC = B * C
    H2, W2 = 2 * H, 2 * W
    dt = x.dtype

    # Fold upsample + smooth into one per-axis operator; cast once to the input
    # dtype so the MXU sees native-precision operands.
    mh = (_smooth1d_matrix(H2) @ _bilinear_up2_matrix(H)).astype(np.float32)     # (2H, H)
    mwt = (_smooth1d_matrix(W2) @ _bilinear_up2_matrix(W)).T.astype(np.float32)  # (W, 2W)
    mh = jnp.asarray(mh, dtype=dt)
    mwt = jnp.asarray(mwt, dtype=dt)

    x3 = x.reshape(BC, H, W)

    if tile_c is None:
        tile_c = _pick_tile_c(BC, H, W, jnp.dtype(dt).itemsize)
    assert BC % tile_c == 0, (BC, tile_c)
    grid = (BC // tile_c,)

    out = pl.pallas_call(
        _upsample_smooth_kernel,
        out_shape=jax.ShapeDtypeStruct((BC, H2, W2), dt),
        grid_spec=pltpu.PrefetchScalarGridSpec(
            num_scalar_prefetch=0,
            grid=grid,
            in_specs=[
                pl.BlockSpec((tile_c, H, W), lambda i: (i, 0, 0)),   # channel block
                pl.BlockSpec((H2, H), lambda i: (0, 0)),             # grid-invariant operator
                pl.BlockSpec((W, W2), lambda i: (0, 0)),             # grid-invariant operator
            ],
            out_specs=pl.BlockSpec((tile_c, H2, W2), lambda i: (i, 0, 0)),
        ),
        compiler_params=pltpu.CompilerParams(
            dimension_semantics=("parallel",),
        ),
    )(x3, mh, mwt)
    return out.reshape(B, C, H2, W2)


# ---------------------------------------------------------------------------
# Plain-JAX reference (gather-based, independent of the matrix formulation).
# ---------------------------------------------------------------------------
def upsample_smooth_ref(x):
    b, c, h, w = x.shape

    def idx_weights(n):
        o = np.arange(2 * n)
        src = np.maximum((o + 0.5) / 2.0 - 0.5, 0.0)
        i0 = np.minimum(np.floor(src).astype(np.int32), n - 1)
        i1 = np.minimum(i0 + 1, n - 1)
        w1 = (src - i0).astype(np.float32)
        return i0, i1, w1

    i0h, i1h, w1h = idx_weights(h)
    i0w, i1w, w1w = idx_weights(w)
    xh = (x[:, :, i0h, :] * (1.0 - w1h)[None, None, :, None]
          + x[:, :, i1h, :] * w1h[None, None, :, None])
    up = xh[:, :, :, i0w] * (1.0 - w1w) + xh[:, :, :, i1w] * w1w

    p = jnp.pad(up, ((0, 0), (0, 0), (1, 1), (1, 1)), mode='edge')
    kk = np.array([[1, 2, 1], [2, 4, 2], [1, 2, 1]], dtype=np.float32) / 16.0
    out = jnp.zeros_like(up)
    for di in range(3):
        for dj in range(3):
            out = out + kk[di, dj] * p[:, :, di:di + 2 * h, dj:dj + 2 * w]
    return out


if __name__ == "__main__":
    key = jax.random.PRNGKey(0)
    x = jax.random.normal(key, (2, 4, 16, 16), dtype=jnp.float32)

    y = upsample_smooth(x)
    y = jax.block_until_ready(y)

    y_ref = upsample_smooth_ref(x)
    assert y.shape == (2, 4, 32, 32)
    max_err = float(jnp.max(jnp.abs(y - y_ref)))
    assert jnp.allclose(y, y_ref, atol=1e-4, rtol=1e-4), max_err

    print("KERNEL_OK")
</pallas_src>

<mosaic_0001>
module attributes {stable_mosaic.version = 11 : i64} {
  func.func @_upsample_smooth_kernel(%arg0: i32, %arg1: memref<4x16x16xf32, #tpu.memory_space<vmem>>, %arg2: memref<32x16xf32, #tpu.memory_space<vmem>>, %arg3: memref<16x32xf32, #tpu.memory_space<vmem>>, %arg4: memref<4x32x32xf32, #tpu.memory_space<vmem>>) attributes {dimension_semantics = [#tpu.dimension_semantics<parallel>], iteration_bounds = array<i64: 2>, scalar_prefetch = 0 : i64, scratch_operands = 0 : i64, tpu.core_type = #tpu.core_type<tc>, window_params = [{transform_indices = @transform_0, window_bounds = array<i64: 4, 16, 16>}, {pipeline_mode = #tpu.pipeline_mode<synchronous>, transform_indices = @transform_1, window_bounds = array<i64: 32, 16>}, {pipeline_mode = #tpu.pipeline_mode<synchronous>, transform_indices = @transform_2, window_bounds = array<i64: 16, 32>}, {transform_indices = @transform_3, window_bounds = array<i64: 4, 32, 32>}]} {
    %c0 = arith.constant 0 : index
    %c0_0 = arith.constant 0 : index
    %c0_1 = arith.constant 0 : index
    %0 = vector.load %arg1[%c0, %c0_0, %c0_1] : memref<4x16x16xf32, #tpu.memory_space<vmem>>, vector<4x16x16xf32>
    %c0_2 = arith.constant 0 : index
    %c0_3 = arith.constant 0 : index
    %1 = vector.load %arg3[%c0_2, %c0_3] : memref<16x32xf32, #tpu.memory_space<vmem>>, vector<16x32xf32>
    %2 = vector.shape_cast %1 : vector<16x32xf32> to vector<1x16x32xf32>
    %3 = vector.broadcast %2 : vector<1x16x32xf32> to vector<4x16x32xf32>
    "tpu.trace_start"() <{level = 10 : i32, message = "bhw,bwq->bhq"}> : () -> ()
    %cst = arith.constant dense<0.000000e+00> : vector<4x16x32xf32>
    %4 = tpu.matmul %0, %3, %cst {dimension_numbers = #tpu.dot_dimension_numbers<[2], [1], [1], [2], [0, 0, 0, 1, 1, 2], [0], [0]>} : vector<4x16x16xf32>, vector<4x16x32xf32>, vector<4x16x32xf32> -> vector<4x16x32xf32>
    "tpu.trace_stop"() : () -> ()
    %c0_4 = arith.constant 0 : index
    %c0_5 = arith.constant 0 : index
    %5 = vector.load %arg2[%c0_4, %c0_5] : memref<32x16xf32, #tpu.memory_space<vmem>>, vector<32x16xf32>
    %6 = vector.shape_cast %5 : vector<32x16xf32> to vector<1x32x16xf32>
    %7 = vector.broadcast %6 : vector<1x32x16xf32> to vector<4x32x16xf32>
    "tpu.trace_start"() <{level = 10 : i32, message = "bph,bhq->bpq"}> : () -> ()
    %cst_6 = arith.constant dense<0.000000e+00> : vector<4x32x32xf32>
    %8 = tpu.matmul %7, %4, %cst_6 {dimension_numbers = #tpu.dot_dimension_numbers<[2], [1], [1], [2], [0, 0, 0, 1, 1, 2], [0], [0]>} : vector<4x32x16xf32>, vector<4x16x32xf32>, vector<4x32x32xf32> -> vector<4x32x32xf32>
    "tpu.trace_stop"() : () -> ()
    %c0_7 = arith.constant 0 : index
    %c0_8 = arith.constant 0 : index
    %c0_9 = arith.constant 0 : index
    %9 = vector.load %arg4[%c0_7, %c0_8, %c0_9] : memref<4x32x32xf32, #tpu.memory_space<vmem>>, vector<4x32x32xf32>
    tpu.vector_store %arg4[%c0_7, %c0_8, %c0_9], %8 {strides = array<i32>} : memref<4x32x32xf32, #tpu.memory_space<vmem>>, vector<4x32x32xf32>,
    return
  }
  func.func @transform_0(%arg0: i32) -> (i32, i32, i32) {
    %c0_i32 = arith.constant 0 : i32
    %c0_i32_0 = arith.constant 0 : i32
    %c0_i32_1 = arith.constant 0 : i32
    return %arg0, %c0_i32, %c0_i32_0 : i32, i32, i32
  }
  func.func @transform_1(%arg0: i32) -> (i32, i32) {
    %c0_i32 = arith.constant 0 : i32
    %c0_i32_0 = arith.constant 0 : i32
    %c0_i32_1 = arith.constant 0 : i32
    return %c0_i32, %c0_i32_0 : i32, i32
  }
  func.func @transform_2(%arg0: i32) -> (i32, i32) {
    %c0_i32 = arith.constant 0 : i32
    %c0_i32_0 = arith.constant 0 : i32
    %c0_i32_1 = arith.constant 0 : i32
    return %c0_i32, %c0_i32_0 : i32, i32
  }
  func.func @transform_3(%arg0: i32) -> (i32, i32, i32) {
    %c0_i32 = arith.constant 0 : i32
    %c0_i32_0 = arith.constant 0 : i32
    %c0_i32_1 = arith.constant 0 : i32
    return %arg0, %c0_i32, %c0_i32_0 : i32, i32, i32
  }
}

</mosaic_0001>

<llo_original>
// kernel: tpu_custom_call.1
$region0: #{tpu_custom_call.1}
  #allocation0 [shape = 'u32[]', space=smem, size = 0x4, offset = 0x4, fixed_abs, tag = 'smem constant byte address 0x4 - core index']
  #allocation1 [shape = 'u32[144,128]{1,0:T(1,128)}', space=vmem, size = 0x12000, scoped, tag = 'internal scratch']
  %s0 = inlined_call_operand.hbm [shape: f32[8,16,16], index: 0, kind: input, shape index: {}]
  %s1 = inlined_call_operand.vmem [shape: f32[32,16], index: 1, kind: input, shape index: {}]
  %s2 = inlined_call_operand.vmem [shape: f32[16,32], index: 2, kind: input, shape index: {}]
  %s3 = inlined_call_operand.hbm [shape: f32[8,32,32], index: 3, kind: output, shape index: {}]
  %s4 = sld [smem:[#allocation0]]
  $region49: #{tpu_custom_call.1} parent=0
    _
  %s6 = ssub.s32 1, %s4
  %s7 = scalar_select 0, %s6, %s4
  $region1: #{tpu_custom_call.1} parent=0
    #allocation2 [shape = 'u8[65536]{0}', space=vmem, size = 0x10000, scoped, tag = 'input window, operand 0']
    #allocation3 [shape = 's32[2]{0}', space=sflag, size = 0x8, scoped, tag = 'scoped memory for tpu_custom_call.1']
    #allocation4 [shape = 's32[2]{0}', space=sflag, size = 0x8, scoped, tag = 'scoped memory for tpu_custom_call.1']
    #allocation5 [shape = 'u8[131072]{0}', space=vmem, size = 0x20000, scoped, tag = 'output window, operand 0']
    %8 = vsyncpa [#allocation3], 0
    %s9 = scalar_lea.sflag [#allocation3], 1
    %10 = vsyncpa %s9, 0
    %11 = vsyncpa [#allocation4], 0
    %s12 = scalar_lea.sflag [#allocation4], 1
    %13 = vsyncpa %s12, 0
    loop: start=0, step=1, limit=4
    $region2: #{tpu_custom_call.1} parent=1 // loop_pre_header
      _
    $region3: #{tpu_custom_call.1} parent=1 // loop_header
      %s15 = sphi 0, %s19
      %p16 = scmp.ge.s32.totalorder %s15, 4
      %s25 = sphi 0, %s27
      %s28 = sphi 0, %s25
      %s29 = sphi 0, %s28
      %s45 = sphi 0, %s29
      %s49 = sphi 0, %s49
      %s51 = sphi 0, %s49
      %s52 = sphi 0, %s51
      %s66 = sphi 0, %s52
      %s70 = sphi 0, %s70
      %s72 = sphi 0, %s70
      %s73 = sphi 0, %s72
      %s87 = sphi 0, %s73
      %s93 = sphi 0, %s95
      %s96 = sphi 0, %s93
      %s97 = sphi 0, %s96
      %s113 = sphi 0, %s97
    $region4: #{tpu_custom_call.1} parent=1 // loop_header_branch
      %18 = sbr.rel (%p16) target = $region8
    $region5: #{tpu_custom_call.1} parent=1 // loop_body
      %s20 = ssub.s32 %s15, 1
      %s21 = ssub.s32 %s15, 2
      %s22 = sadd.s32 %s15, 1
      %s23 = ssub.s32 %s15, %s22
      %p24 = scmp.eq.s32.totalorder %s23, 0
      %s26 = sadd.s32 %s25, 1
      %s27 = scalar_select %p24, %s25, %s26
      %p30 = pneg %p24
      %p31 = scmp.eq.s32.totalorder %s15, 1
      %p32 = por %p30, %p31
      %p33 = scmp.ne.s32.totalorder %s25, %s28
      %p34 = scmp.eq.s32.totalorder %s15, 0
      %p35 = por %p33, %p34
      %p36 = scmp.ne.s32.totalorder %s25, %s28
      %p37 = scmp.eq.s32.totalorder %s20, 1
      %p38 = por %p36, %p37
      %p39 = scmp.ne.s32.totalorder %s28, %s29
      %p40 = scmp.eq.s32.totalorder %s20, 0
      %p41 = por %p39, %p40
      %p42 = scmp.ne.s32.totalorder %s28, %s29
      %p43 = scmp.eq.s32.totalorder %s21, 1
      %p44 = por %p42, %p43
      %p46 = scmp.ne.s32.totalorder %s29, %s45
      %p47 = scmp.eq.s32.totalorder %s21, 0
      %p48 = por %p46, %p47
      %s50 = sadd.s32 %s49, 1
      %p53 = scmp.eq.s32.totalorder %s15, 1
      %p54 = scmp.ne.s32.totalorder %s49, %s51
      %p55 = scmp.eq.s32.totalorder %s15, 0
      %p56 = por %p54, %p55
      %p57 = scmp.ne.s32.totalorder %s49, %s51
      %p58 = scmp.eq.s32.totalorder %s20, 1
      %p59 = por %p57, %p58
      %p60 = scmp.ne.s32.totalorder %s51, %s52
      %p61 = scmp.eq.s32.totalorder %s20, 0
      %p62 = por %p60, %p61
      %p63 = scmp.ne.s32.totalorder %s51, %s52
      %p64 = scmp.eq.s32.totalorder %s21, 1
      %p65 = por %p63, %p64
      %p67 = scmp.ne.s32.totalorder %s52, %s66
      %p68 = scmp.eq.s32.totalorder %s21, 0
      %p69 = por %p67, %p68
      %s71 = sadd.s32 %s70, 1
      %p74 = scmp.eq.s32.totalorder %s15, 1
      %p75 = scmp.ne.s32.totalorder %s70, %s72
      %p76 = scmp.eq.s32.totalorder %s15, 0
      %p77 = por %p75, %p76
      %p78 = scmp.ne.s32.totalorder %s70, %s72
      %p79 = scmp.eq.s32.totalorder %s20, 1
      %p80 = por %p78, %p79
      %p81 = scmp.ne.s32.totalorder %s72, %s73
      %p82 = scmp.eq.s32.totalorder %s20, 0
      %p83 = por %p81, %p82
      %p84 = scmp.ne.s32.totalorder %s72, %s73
      %p85 = scmp.eq.s32.totalorder %s21, 1
      %p86 = por %p84, %p85
      %p88 = scmp.ne.s32.totalorder %s73, %s87
      %p89 = scmp.eq.s32.totalorder %s21, 0
      %p90 = por %p88, %p89
      %s91 = ssub.s32 %s15, %s22
      %p92 = scmp.eq.s32.totalorder %s91, 0
      %s94 = sadd.s32 %s93, 1
      %s95 = scalar_select %p92, %s93, %s94
      %p98 = pneg %p92
      %p99 = scmp.eq.s32.totalorder %s15, 1
      %p100 = por %p98, %p99
      %p101 = scmp.ne.s32.totalorder %s93, %s96
      %p102 = scmp.eq.s32.totalorder %s15, 0
      %p103 = por %p101, %p102
      %p104 = scmp.ne.s32.totalorder %s93, %s96
      %p105 = scmp.eq.s32.totalorder %s20, 1
      %p106 = por %p104, %p105
      %p107 = scmp.ne.s32.totalorder %s96, %s97
      %p108 = scmp.eq.s32.totalorder %s20, 0
      %p109 = por %p107, %p108
      %p110 = scmp.ne.s32.totalorder %s96, %s97
      %p111 = scmp.eq.s32.totalorder %s21, 1
      %p112 = por %p110, %p111
      %p114 = scmp.ne.s32.totalorder %s97, %s113
      %p115 = scmp.eq.s32.totalorder %s21, 0
      %p116 = por %p114, %p115
      %p117 = scmp.le.s32.totalorder 1, %s15
      %p118 = scmp.lt.s32.totalorder %s15, 3
      %p119 = pnand %p117, %p118
      %p120 = pneg %p119
      // Predicated region
      $region9: #{tpu_custom_call.1} parent=5 // pred_check
        _
      $region10: #{tpu_custom_call.1} parent=5 // pred_check_branch
        %122 = sbr.rel (%p119) target = $region12
      $region11: #{tpu_custom_call.1} parent=5 // pred_region
        %s123 = ssub.s32 %s15, 1
        // Predicated region
        $region13: #{tpu_custom_call.1} parent=11 // pred_check
          %p124 = pneg %p62
        $region14: #{tpu_custom_call.1} parent=11 // pred_check_branch
          %126 = sbr.rel (%p124) target = $region16
        $region15: #{tpu_custom_call.1} parent=11 // pred_region
          _
        $region16: #{tpu_custom_call.1} parent=11 // pred_fallthru
          _
        // Predicated region
        $region17: #{tpu_custom_call.1} parent=11 // pred_check
          %p127 = pneg %p83
        $region18: #{tpu_custom_call.1} parent=11 // pred_check_branch
          %129 = sbr.rel (%p127) target = $region20
        $region19: #{tpu_custom_call.1} parent=11 // pred_region
          _
        $region20: #{tpu_custom_call.1} parent=11 // pred_fallthru
          _
      $region12: #{tpu_custom_call.1} parent=5 // pred_fallthru
        _
      %p130 = scmp.lt.s32.totalorder %s15, 2
      // Predicated region
      $region21: #{tpu_custom_call.1} parent=5 // pred_check
        %p131 = pneg %p130
      $region22: #{tpu_custom_call.1} parent=5 // pred_check_branch
        %133 = sbr.rel (%p131) target = $region24
      $region23: #{tpu_custom_call.1} parent=5 // pred_region
        // Predicated region
        $region25: #{tpu_custom_call.1} parent=23 // pred_check
          %p134 = pneg %p35
        $region26: #{tpu_custom_call.1} parent=23 // pred_check_branch
          %136 = sbr.rel (%p134) target = $region28
        $region27: #{tpu_custom_call.1} parent=23 // pred_region
          %s137 = sand.u32 %s25, 1
          %s138 = scalar_lea.sflag [#allocation3], %s137
          %s139 = sand.u32 %s25, 1
          %s140 = smul.addr %s139, 64
          %s141 = scalar_lea.vmem [#allocation2], %s140
          %s142 = smul.u32 4, %s15
          %s144 = ssub.s32 1024, 1024
          %145 = vsyncadd %s138, %s144
          %s146 = smul.addr %s142, 2
          %s147 = smul.addr %s146, 128
          %s148 = scalar_lea.hbm %s0, %s147
          %s149 = sshll.u32 %s141, 4
          %s150 = int_to_ptr.vmem [resolvable:$true] %s149
          %155 = dma.hbm_to_vmem [thread:$0]  %s148, 1024, %s150, %s138, 128, 128, 8
        $region28: #{tpu_custom_call.1} parent=23 // pred_fallthru
          _
      $region24: #{tpu_custom_call.1} parent=5 // pred_fallthru
        _
      %p156 = scmp.le.s32.totalorder 1, %s15
      %p157 = scmp.lt.s32.totalorder %s15, 3
      %p158 = pnand %p156, %p157
      %p159 = pneg %p158
      // Predicated region
      $region29: #{tpu_custom_call.1} parent=5 // pred_check
        _
      $region30: #{tpu_custom_call.1} parent=5 // pred_check_branch
        %161 = sbr.rel (%p158) target = $region32
      $region31: #{tpu_custom_call.1} parent=5 // pred_region
        %s162 = ssub.s32 %s15, 1
        %s163 = sand.u32 %s28, 1
        %s164 = scalar_lea.sflag [#allocation3], %s163
        %s165 = sand.u32 %s28, 1
        %s166 = smul.addr %s165, 64
        %s167 = scalar_lea.vmem [#allocation2], %s166
        // Predicated region
        $region33: #{tpu_custom_call.1} parent=31 // pred_check
          %p168 = pneg %p41
        $region34: #{tpu_custom_call.1} parent=31 // pred_check_branch
          %170 = sbr.rel (%p168) target = $region36
        $region35: #{tpu_custom_call.1} parent=31 // pred_region
          %171 = dma.done %s164, 1024
        $region36: #{tpu_custom_call.1} parent=31 // pred_fallthru
          _
        %s172 = sand.u32 %s28, 1
        %s173 = scalar_lea.sflag [#allocation3], %s172
        %s174 = sand.u32 %s28, 1
        %s175 = smul.addr %s174, 64
        %s176 = scalar_lea.vmem [#allocation2], %s175
        %p177 = pneg %p41
        %p178 = pneg %p38
        %p179 = pneg %p62
        %p180 = pneg %p59
        %p181 = pneg %p83
        %p182 = pneg %p80
        %p183 = pneg %p109
        %p184 = pneg %p106
        %s185 = sand.u32 %s96, 1
        %s186 = scalar_lea.sflag [#allocation4], %s185
        %s187 = sand.u32 %s96, 1
        %s188 = smul.addr %s187, 128
        %s189 = scalar_lea.vmem [#allocation5], %s188
        %s190 = smul.u32 4, %s20
        %s191 = smul.u32 4, %s20
        %v192 = vld [vmem:[%s167] sm:$0xff]
        %v193 = vld [vmem:[%s167 + $0x8] sm:$0xff]
        %v194 = vld [vmem:[%s167 + $0x10] sm:$0xff]
        %v195 = vld [vmem:[%s167 + $0x18] sm:$0xff]
        %v196 = vld [vmem:[%s167 + $0x20] sm:$0xff]
        %v197 = vld [vmem:[%s167 + $0x28] sm:$0xff]
        %v198 = vld [vmem:[%s167 + $0x30] sm:$0xff]
        %v199 = vld [vmem:[%s167 + $0x38] sm:$0xff]
        %v200 = vld [vmem:[%s2] sm:$0xff]
        %v201 = vld [vmem:[%s2 + $0x8] sm:$0xff]
        %vm202 = vcmask 130048
        %v204 = vsel %vm202, %v192, 0
        %v207 = vsel %vm202, %v193, 0
        %209 = vmatprep.subr.mxu0 0.0
        %210 = vmatpush1.msra.mxu0 %v200
        %211 = vmatprep.subr.mxu0 0.0
        %212 = vmatpush1.msra.mxu0 %v201
        %213 = vmatprep.subr.mxu0 0.0
        %214 = vmatpush1.msra.mxu0 0.0
        %215 = vmatprep.subr.mxu0 0.0
        %216 = vmatpush1.msra.mxu0 0.0
        %217 = vmatprep.subr.mxu0 0.0
        %218 = vmatpush1.msra.mxu0 0.0
        %219 = vmatprep.subr.mxu0 0.0
        %220 = vmatpush1.msra.mxu0 0.0
        %221 = vmatprep.subr.mxu0 0.0
        %222 = vmatpush1.msra.mxu0 0.0
        %223 = vmatprep.subr.mxu0 0.0
        %224 = vmatpush1.msra.mxu0 0.0
        %225 = vmatprep.subr.mxu0 0.0
        %226 = vmatpush1.msra.mxu0 0.0
        %227 = vmatprep.subr.mxu0 0.0
        %228 = vmatpush1.msra.mxu0 0.0
        %229 = vmatprep.subr.mxu0 0.0
        %230 = vmatpush1.msra.mxu0 0.0
        %231 = vmatprep.subr.mxu0 0.0
        %232 = vmatpush1.msra.mxu0 0.0
        %233 = vmatprep.subr.mxu0 0.0
        %234 = vmatpush1.msra.mxu0 0.0
        %235 = vmatprep.subr.mxu0 0.0
        %236 = vmatpush1.msra.mxu0 0.0
        %237 = vmatprep.subr.mxu0 0.0
        %238 = vmatpush1.msra.mxu0 0.0
        %239 = vmatprep.subr.mxu0 0.0
        %240 = vmatpush1.msra.mxu0 0.0
        %241 = vmatprep.subr.mxu0 0.0
        %242 = vmatpush1.msra.mxu0 0.0
        %243 = vmatprep.subr.mxu0 0.0
        %244 = vmatpush1.msra.mxu0 0.0
        %245 = vmatprep.subr.mxu0 0.0
        %246 = vmatpush1.msra.mxu0 0.0
        %247 = vmatprep.subr.mxu0 0.0
        %248 = vmatpush1.msra.mxu0 0.0
        %249 = vmatprep.subr.mxu0 0.0
        %250 = vmatpush1.msra.mxu0 0.0
        %251 = vmatprep.subr.mxu0 0.0
        %252 = vmatpush1.msra.mxu0 0.0
        %253 = vmatprep.subr.mxu0 0.0
        %254 = vmatpush1.msra.mxu0 0.0
        %255 = vmatprep.subr.mxu0 0.0
        %256 = vmatpush1.msra.mxu0 0.0
        %257 = vmatprep.subr.mxu0 0.0
        %258 = vmatpush1.msra.mxu0 0.0
        %259 = vmatprep.subr.mxu0 0.0
        %260 = vmatpush1.msra.mxu0 0.0
        %261 = vmatprep.subr.mxu0 0.0
        %262 = vmatpush1.msra.mxu0 0.0
        %263 = vmatprep.subr.mxu0 0.0
        %264 = vmatpush1.msra.mxu0 0.0
        %265 = vmatprep.subr.mxu0 0.0
        %266 = vmatpush1.msra.mxu0 0.0
        %267 = vmatprep.subr.mxu0 0.0
        %268 = vmatpush1.msra.mxu0 0.0
        %269 = vmatprep.subr.mxu0 0.0
        %270 = vmatpush1.msra.mxu0 0.0
        %271 = vmatprep.subr.mxu0 0.0
        %272 = vmatpush1.msra.mxu0 0.0
        %273 = vmatprep.mubr.f32.mxu0 0.0
        %274 = vmatmul.mubr.f32.gmra.mrb[0].mxu0 %v204
        %v275 = vpop.f32.mrb[0].mxu0
        %v276 = vadd.f32 0.0, %v275
        %v277 = vpop.f32.mrb[0].mxu0
        %278 = vmatprep.mubr.f32.mxu0 0.0
        %279 = vmatmul.mubr.f32.gmra.mrb[0].mxu0 %v207
        %v280 = vpop.f32.mrb[0].mxu0
        %v281 = vadd.f32 0.0, %v280
        %v282 = vpop.f32.mrb[0].mxu0
        %283 = vdwg.mxu0
        %v285 = vsel %vm202, %v194, 0
        %v288 = vsel %vm202, %v195, 0
        %290 = vmatprep.subr.mxu0 0.0
        %291 = vmatpush1.msra.mxu0 %v200
        %292 = vmatprep.subr.mxu0 0.0
        %293 = vmatpush1.msra.mxu0 %v201
        %294 = vmatprep.subr.mxu0 0.0
        %295 = vmatpush1.msra.mxu0 0.0
        %296 = vmatprep.subr.mxu0 0.0
        %297 = vmatpush1.msra.mxu0 0.0
        %298 = vmatprep.subr.mxu0 0.0
        %299 = vmatpush1.msra.mxu0 0.0
        %300 = vmatprep.subr.mxu0 0.0
        %301 = vmatpush1.msra.mxu0 0.0
        %302 = vmatprep.subr.mxu0 0.0
        %303 = vmatpush1.msra.mxu0 0.0
        %304 = vmatprep.subr.mxu0 0.0
        %305 = vmatpush1.msra.mxu0 0.0
        %306 = vmatprep.subr.mxu0 0.0
        %307 = vmatpush1.msra.mxu0 0.0
        %308 = vmatprep.subr.mxu0 0.0
        %309 = vmatpush1.msra.mxu0 0.0
        %310 = vmatprep.subr.mxu0 0.0
        %311 = vmatpush1.msra.mxu0 0.0
        %312 = vmatprep.subr.mxu0 0.0
        %313 = vmatpush1.msra.mxu0 0.0
        %314 = vmatprep.subr.mxu0 0.0
        %315 = vmatpush1.msra.mxu0 0.0
        %316 = vmatprep.subr.mxu0 0.0
        %317 = vmatpush1.msra.mxu0 0.0
        %318 = vmatprep.subr.mxu0 0.0
        %319 = vmatpush1.msra.mxu0 0.0
        %320 = vmatprep.subr.mxu0 0.0
        %321 = vmatpush1.msra.mxu0 0.0
        %322 = vmatprep.subr.mxu0 0.0
        %323 = vmatpush1.msra.mxu0 0.0
        %324 = vmatprep.subr.mxu0 0.0
        %325 = vmatpush1.msra.mxu0 0.0
        %326 = vmatprep.subr.mxu0 0.0
        %327 = vmatpush1.msra.mxu0 0.0
        %328 = vmatprep.subr.mxu0 0.0
        %329 = vmatpush1.msra.mxu0 0.0
        %330 = vmatprep.subr.mxu0 0.0
        %331 = vmatpush1.msra.mxu0 0.0
        %332 = vmatprep.subr.mxu0 0.0
        %333 = vmatpush1.msra.mxu0 0.0
        %334 = vmatprep.subr.mxu0 0.0
        %335 = vmatpush1.msra.mxu0 0.0
        %336 = vmatprep.subr.mxu0 0.0
        %337 = vmatpush1.msra.mxu0 0.0
        %338 = vmatprep.subr.mxu0 0.0
        %339 = vmatpush1.msra.mxu0 0.0
        %340 = vmatprep.subr.mxu0 0.0
        %341 = vmatpush1.msra.mxu0 0.0
        %342 = vmatprep.subr.mxu0 0.0
        %343 = vmatpush1.msra.mxu0 0.0
        %344 = vmatprep.subr.mxu0 0.0
        %345 = vmatpush1.msra.mxu0 0.0
        %346 = vmatprep.subr.mxu0 0.0
        %347 = vmatpush1.msra.mxu0 0.0
        %348 = vmatprep.subr.mxu0 0.0
        %349 = vmatpush1.msra.mxu0 0.0
        %350 = vmatprep.subr.mxu0 0.0
        %351 = vmatpush1.msra.mxu0 0.0
        %352 = vmatprep.subr.mxu0 0.0
        %353 = vmatpush1.msra.mxu0 0.0
        %354 = vmatprep.mubr.f32.mxu0 0.0
        %355 = vmatmul.mubr.f32.gmra.mrb[0].mxu0 %v285
        %v356 = vpop.f32.mrb[0].mxu0
        %v357 = vadd.f32 0.0, %v356
        %v358 = vpop.f32.mrb[0].mxu0
        %359 = vmatprep.mubr.f32.mxu0 0.0
        %360 = vmatmul.mubr.f32.gmra.mrb[0].mxu0 %v288
        %v361 = vpop.f32.mrb[0].mxu0
        %v362 = vadd.f32 0.0, %v361
        %v363 = vpop.f32.mrb[0].mxu0
        %364 = vdwg.mxu0
        %v366 = vsel %vm202, %v196, 0
        %v369 = vsel %vm202, %v197, 0
        %371 = vmatprep.subr.mxu0 0.0
        %372 = vmatpush1.msra.mxu0 %v200
        %373 = vmatprep.subr.mxu0 0.0
        %374 = vmatpush1.msra.mxu0 %v201
        %375 = vmatprep.subr.mxu0 0.0
        %376 = vmatpush1.msra.mxu0 0.0
        %377 = vmatprep.subr.mxu0 0.0
        %378 = vmatpush1.msra.mxu0 0.0
        %379 = vmatprep.subr.mxu0 0.0
        %380 = vmatpush1.msra.mxu0 0.0
        %381 = vmatprep.subr.mxu0 0.0
        %382 = vmatpush1.msra.mxu0 0.0
        %383 = vmatprep.subr.mxu0 0.0
        %384 = vmatpush1.msra.mxu0 0.0
        %385 = vmatprep.subr.mxu0 0.0
        %386 = vmatpush1.msra.mxu0 0.0
        %387 = vmatprep.subr.mxu0 0.0
        %388 = vmatpush1.msra.mxu0 0.0
        %389 = vmatprep.subr.mxu0 0.0
        %390 = vmatpush1.msra.mxu0 0.0
        %391 = vmatprep.subr.mxu0 0.0
        %392 = vmatpush1.msra.mxu0 0.0
        %393 = vmatprep.subr.mxu0 0.0
        %394 = vmatpush1.msra.mxu0 0.0
        %395 = vmatprep.subr.mxu0 0.0
        %396 = vmatpush1.msra.mxu0 0.0
        %397 = vmatprep.subr.mxu0 0.0
        %398 = vmatpush1.msra.mxu0 0.0
        %399 = vmatprep.subr.mxu0 0.0
        %400 = vmatpush1.msra.mxu0 0.0
        %401 = vmatprep.subr.mxu0 0.0
        %402 = vmatpush1.msra.mxu0 0.0
        %403 = vmatprep.subr.mxu0 0.0
        %404 = vmatpush1.msra.mxu0 0.0
        %405 = vmatprep.subr.mxu0 0.0
        %406 = vmatpush1.msra.mxu0 0.0
        %407 = vmatprep.subr.mxu0 0.0
        %408 = vmatpush1.msra.mxu0 0.0
        %409 = vmatprep.subr.mxu0 0.0
        %410 = vmatpush1.msra.mxu0 0.0
        %411 = vmatprep.subr.mxu0 0.0
        %412 = vmatpush1.msra.mxu0 0.0
        %413 = vmatprep.subr.mxu0 0.0
        %414 = vmatpush1.msra.mxu0 0.0
        %415 = vmatprep.subr.mxu0 0.0
        %416 = vmatpush1.msra.mxu0 0.0
        %417 = vmatprep.subr.mxu0 0.0
        %418 = vmatpush1.msra.mxu0 0.0
        %419 = vmatprep.subr.mxu0 0.0
        %420 = vmatpush1.msra.mxu0 0.0
        %421 = vmatprep.subr.mxu0 0.0
        %422 = vmatpush1.msra.mxu0 0.0
        %423 = vmatprep.subr.mxu0 0.0
        %424 = vmatpush1.msra.mxu0 0.0
        %425 = vmatprep.subr.mxu0 0.0
        %426 = vmatpush1.msra.mxu0 0.0
        %427 = vmatprep.subr.mxu0 0.0
        %428 = vmatpush1.msra.mxu0 0.0
        %429 = vmatprep.subr.mxu0 0.0
        %430 = vmatpush1.msra.mxu0 0.0
        %431 = vmatprep.subr.mxu0 0.0
        %432 = vmatpush1.msra.mxu0 0.0
        %433 = vmatprep.subr.mxu0 0.0
        %434 = vmatpush1.msra.mxu0 0.0
        %435 = vmatprep.mubr.f32.mxu0 0.0
        %436 = vmatmul.mubr.f32.gmra.mrb[0].mxu0 %v366
        %v437 = vpop.f32.mrb[0].mxu0
        %v438 = vadd.f32 0.0, %v437
        %v439 = vpop.f32.mrb[0].mxu0
        %440 = vmatprep.mubr.f32.mxu0 0.0
        %441 = vmatmul.mubr.f32.gmra.mrb[0].mxu0 %v369
        %v442 = vpop.f32.mrb[0].mxu0
        %v443 = vadd.f32 0.0, %v442
        %v444 = vpop.f32.mrb[0].mxu0
        %445 = vdwg.mxu0
        %v447 = vsel %vm202, %v198, 0
        %v450 = vsel %vm202, %v199, 0
        %452 = vmatprep.subr.mxu0 0.0
        %453 = vmatpush1.msra.mxu0 %v200
        %454 = vmatprep.subr.mxu0 0.0
        %455 = vmatpush1.msra.mxu0 %v201
        %456 = vmatprep.subr.mxu0 0.0
        %457 = vmatpush1.msra.mxu0 0.0
        %458 = vmatprep.subr.mxu0 0.0
        %459 = vmatpush1.msra.mxu0 0.0
        %460 = vmatprep.subr.mxu0 0.0
        %461 = vmatpush1.msra.mxu0 0.0
        %462 = vmatprep.subr.mxu0 0.0
        %463 = vmatpush1.msra.mxu0 0.0
        %464 = vmatprep.subr.mxu0 0.0
        %465 = vmatpush1.msra.mxu0 0.0
        %466 = vmatprep.subr.mxu0 0.0
        %467 = vmatpush1.msra.mxu0 0.0
        %468 = vmatprep.subr.mxu0 0.0
        %469 = vmatpush1.msra.mxu0 0.0
        %470 = vmatprep.subr.mxu0 0.0
        %471 = vmatpush1.msra.mxu0 0.0
        %472 = vmatprep.subr.mxu0 0.0
        %473 = vmatpush1.msra.mxu0 0.0
        %474 = vmatprep.subr.mxu0 0.0
        %475 = vmatpush1.msra.mxu0 0.0
        %476 = vmatprep.subr.mxu0 0.0
        %477 = vmatpush1.msra.mxu0 0.0
        %478 = vmatprep.subr.mxu0 0.0
        %479 = vmatpush1.msra.mxu0 0.0
        %480 = vmatprep.subr.mxu0 0.0
        %481 = vmatpush1.msra.mxu0 0.0
        %482 = vmatprep.subr.mxu0 0.0
        %483 = vmatpush1.msra.mxu0 0.0
        %484 = vmatprep.subr.mxu0 0.0
        %485 = vmatpush1.msra.mxu0 0.0
        %486 = vmatprep.subr.mxu0 0.0
        %487 = vmatpush1.msra.mxu0 0.0
        %488 = vmatprep.subr.mxu0 0.0
        %489 = vmatpush1.msra.mxu0 0.0
        %490 = vmatprep.subr.mxu0 0.0
        %491 = vmatpush1.msra.mxu0 0.0
        %492 = vmatprep.subr.mxu0 0.0
        %493 = vmatpush1.msra.mxu0 0.0
        %494 = vmatprep.subr.mxu0 0.0
        %495 = vmatpush1.msra.mxu0 0.0
        %496 = vmatprep.subr.mxu0 0.0
        %497 = vmatpush1.msra.mxu0 0.0
        %498 = vmatprep.subr.mxu0 0.0
        %499 = vmatpush1.msra.mxu0 0.0
        %500 = vmatprep.subr.mxu0 0.0
        %501 = vmatpush1.msra.mxu0 0.0
        %502 = vmatprep.subr.mxu0 0.0
        %503 = vmatpush1.msra.mxu0 0.0
        %504 = vmatprep.subr.mxu0 0.0
        %505 = vmatpush1.msra.mxu0 0.0
        %506 = vmatprep.subr.mxu0 0.0
        %507 = vmatpush1.msra.mxu0 0.0
        %508 = vmatprep.subr.mxu0 0.0
        %509 = vmatpush1.msra.mxu0 0.0
        %510 = vmatprep.subr.mxu0 0.0
        %511 = vmatpush1.msra.mxu0 0.0
        %512 = vmatprep.subr.mxu0 0.0
        %513 = vmatpush1.msra.mxu0 0.0
        %514 = vmatprep.subr.mxu0 0.0
        %515 = vmatpush1.msra.mxu0 0.0
        %516 = vmatprep.mubr.f32.mxu0 0.0
        %517 = vmatmul.mubr.f32.gmra.mrb[0].mxu0 %v447
        %v518 = vpop.f32.mrb[0].mxu0
        %v519 = vadd.f32 0.0, %v518
        %v520 = vpop.f32.mrb[0].mxu0
        %521 = vmatprep.mubr.f32.mxu0 0.0
        %522 = vmatmul.mubr.f32.gmra.mrb[0].mxu0 %v450
        %v523 = vpop.f32.mrb[0].mxu0
        %v524 = vadd.f32 0.0, %v523
        %v525 = vpop.f32.mrb[0].mxu0
        %526 = vdwg.mxu0
        %v527 = vld [vmem:[%s1] sm:$0xff]
        %v528 = vld [vmem:[%s1 + $0x8] sm:$0xff]
        %v529 = vld [vmem:[%s1 + $0x10] sm:$0xff]
        %v530 = vld [vmem:[%s1 + $0x18] sm:$0xff]
        %v532 = vsel %vm202, %v527, 0
        %v535 = vsel %vm202, %v528, 0
        %v538 = vsel %vm202, %v529, 0
        %v541 = vsel %vm202, %v530, 0
        %543 = vmatprep.subr.mxu0 0.0
        %544 = vmatpush1.msra.mxu0 %v276
        %545 = vmatprep.subr.mxu0 0.0
        %546 = vmatpush1.msra.mxu0 %v281
        %547 = vmatprep.subr.mxu0 0.0
        %548 = vmatpush1.msra.mxu0 0.0
        %549 = vmatprep.subr.mxu0 0.0
        %550 = vmatpush1.msra.mxu0 0.0
        %551 = vmatprep.subr.mxu0 0.0
        %552 = vmatpush1.msra.mxu0 0.0
        %553 = vmatprep.subr.mxu0 0.0
        %554 = vmatpush1.msra.mxu0 0.0
        %555 = vmatprep.subr.mxu0 0.0
        %556 = vmatpush1.msra.mxu0 0.0
        %557 = vmatprep.subr.mxu0 0.0
        %558 = vmatpush1.msra.mxu0 0.0
        %559 = vmatprep.subr.mxu0 0.0
        %560 = vmatpush1.msra.mxu0 0.0
        %561 = vmatprep.subr.mxu0 0.0
        %562 = vmatpush1.msra.mxu0 0.0
        %563 = vmatprep.subr.mxu0 0.0
        %564 = vmatpush1.msra.mxu0 0.0
        %565 = vmatprep.subr.mxu0 0.0
        %566 = vmatpush1.msra.mxu0 0.0
        %567 = vmatprep.subr.mxu0 0.0
        %568 = vmatpush1.msra.mxu0 0.0
        %569 = vmatprep.subr.mxu0 0.0
        %570 = vmatpush1.msra.mxu0 0.0
        %571 = vmatprep.subr.mxu0 0.0
        %572 = vmatpush1.msra.mxu0 0.0
        %573 = vmatprep.subr.mxu0 0.0
        %574 = vmatpush1.msra.mxu0 0.0
        %575 = vmatprep.subr.mxu0 0.0
        %576 = vmatpush1.msra.mxu0 0.0
        %577 = vmatprep.subr.mxu0 0.0
        %578 = vmatpush1.msra.mxu0 0.0
        %579 = vmatprep.subr.mxu0 0.0
        %580 = vmatpush1.msra.mxu0 0.0
        %581 = vmatprep.subr.mxu0 0.0
        %582 = vmatpush1.msra.mxu0 0.0
        %583 = vmatprep.subr.mxu0 0.0
        %584 = vmatpush1.msra.mxu0 0.0
        %585 = vmatprep.subr.mxu0 0.0
        %586 = vmatpush1.msra.mxu0 0.0
        %587 = vmatprep.subr.mxu0 0.0
        %588 = vmatpush1.msra.mxu0 0.0
        %589 = vmatprep.subr.mxu0 0.0
        %590 = vmatpush1.msra.mxu0 0.0
        %591 = vmatprep.subr.mxu0 0.0
        %592 = vmatpush1.msra.mxu0 0.0
        %593 = vmatprep.subr.mxu0 0.0
        %594 = vmatpush1.msra.mxu0 0.0
        %595 = vmatprep.subr.mxu0 0.0
        %596 = vmatpush1.msra.mxu0 0.0
        %597 = vmatprep.subr.mxu0 0.0
        %598 = vmatpush1.msra.mxu0 0.0
        %599 = vmatprep.subr.mxu0 0.0
        %600 = vmatpush1.msra.mxu0 0.0
        %601 = vmatprep.subr.mxu0 0.0
        %602 = vmatpush1.msra.mxu0 0.0
        %603 = vmatprep.subr.mxu0 0.0
        %604 = vmatpush1.msra.mxu0 0.0
        %605 = vmatprep.subr.mxu0 0.0
        %606 = vmatpush1.msra.mxu0 0.0
        %607 = vmatprep.mubr.f32.mxu0 0.0
        %608 = vmatmul.mubr.f32.gmra.mrb[0].mxu0 %v532
        %v609 = vpop.f32.mrb[0].mxu0
        %v610 = vadd.f32 0.0, %v609
        %v611 = vpop.f32.mrb[0].mxu0
        %612 = vmatprep.mubr.f32.mxu0 0.0
        %613 = vmatmul.mubr.f32.gmra.mrb[0].mxu0 %v535
        %v614 = vpop.f32.mrb[0].mxu0
        %v615 = vadd.f32 0.0, %v614
        %v616 = vpop.f32.mrb[0].mxu0
        %617 = vmatprep.mubr.f32.mxu0 0.0
        %618 = vmatmul.mubr.f32.gmra.mrb[0].mxu0 %v538
        %v619 = vpop.f32.mrb[0].mxu0
        %v620 = vadd.f32 0.0, %v619
        %v621 = vpop.f32.mrb[0].mxu0
        %622 = vmatprep.mubr.f32.mxu0 0.0
        %623 = vmatmul.mubr.f32.gmra.mrb[0].mxu0 %v541
        %v624 = vpop.f32.mrb[0].mxu0
        %v625 = vadd.f32 0.0, %v624
        %v626 = vpop.f32.mrb[0].mxu0
        %627 = vdwg.mxu0
        %628 = vmatprep.subr.mxu0 0.0
        %629 = vmatpush1.msra.mxu0 %v357
        %630 = vmatprep.subr.mxu0 0.0
        %631 = vmatpush1.msra.mxu0 %v362
        %632 = vmatprep.subr.mxu0 0.0
        %633 = vmatpush1.msra.mxu0 0.0
        %634 = vmatprep.subr.mxu0 0.0
        %635 = vmatpush1.msra.mxu0 0.0
        %636 = vmatprep.subr.mxu0 0.0
        %637 = vmatpush1.msra.mxu0 0.0
        %638 = vmatprep.subr.mxu0 0.0
        %639 = vmatpush1.msra.mxu0 0.0
        %640 = vmatprep.subr.mxu0 0.0
        %641 = vmatpush1.msra.mxu0 0.0
        %642 = vmatprep.subr.mxu0 0.0
        %643 = vmatpush1.msra.mxu0 0.0
        %644 = vmatprep.subr.mxu0 0.0
        %645 = vmatpush1.msra.mxu0 0.0
        %646 = vmatprep.subr.mxu0 0.0
        %647 = vmatpush1.msra.mxu0 0.0
        %648 = vmatprep.subr.mxu0 0.0
        %649 = vmatpush1.msra.mxu0 0.0
        %650 = vmatprep.subr.mxu0 0.0
        %651 = vmatpush1.msra.mxu0 0.0
        %652 = vmatprep.subr.mxu0 0.0
        %653 = vmatpush1.msra.mxu0 0.0
        %654 = vmatprep.subr.mxu0 0.0
        %655 = vmatpush1.msra.mxu0 0.0
        %656 = vmatprep.subr.mxu0 0.0
        %657 = vmatpush1.msra.mxu0 0.0
        %658 = vmatprep.subr.mxu0 0.0
        %659 = vmatpush1.msra.mxu0 0.0
        %660 = vmatprep.subr.mxu0 0.0
        %661 = vmatpush1.msra.mxu0 0.0
        %662 = vmatprep.subr.mxu0 0.0
        %663 = vmatpush1.msra.mxu0 0.0
        %664 = vmatprep.subr.mxu0 0.0
        %665 = vmatpush1.msra.mxu0 0.0
        %666 = vmatprep.subr.mxu0 0.0
        %667 = vmatpush1.msra.mxu0 0.0
        %668 = vmatprep.subr.mxu0 0.0
        %669 = vmatpush1.msra.mxu0 0.0
        %670 = vmatprep.subr.mxu0 0.0
        %671 = vmatpush1.msra.mxu0 0.0
        %672 = vmatprep.subr.mxu0 0.0
        %673 = vmatpush1.msra.mxu0 0.0
        %674 = vmatprep.subr.mxu0 0.0
        %675 = vmatpush1.msra.mxu0 0.0
        %676 = vmatprep.subr.mxu0 0.0
        %677 = vmatpush1.msra.mxu0 0.0
        %678 = vmatprep.subr.mxu0 0.0
        %679 = vmatpush1.msra.mxu0 0.0
        %680 = vmatprep.subr.mxu0 0.0
        %681 = vmatpush1.msra.mxu0 0.0
        %682 = vmatprep.subr.mxu0 0.0
        %683 = vmatpush1.msra.mxu0 0.0
        %684 = vmatprep.subr.mxu0 0.0
        %685 = vmatpush1.msra.mxu0 0.0
        %686 = vmatprep.subr.mxu0 0.0
        %687 = vmatpush1.msra.mxu0 0.0
        %688 = vmatprep.subr.mxu0 0.0
        %689 = vmatpush1.msra.mxu0 0.0
        %690 = vmatprep.subr.mxu0 0.0
        %691 = vmatpush1.msra.mxu0 0.0
        %692 = vmatprep.mubr.f32.mxu0 0.0
        %693 = vmatmul.mubr.f32.gmra.mrb[0].mxu0 %v532
        %v694 = vpop.f32.mrb[0].mxu0
        %v695 = vadd.f32 0.0, %v694
        %v696 = vpop.f32.mrb[0].mxu0
        %697 = vmatprep.mubr.f32.mxu0 0.0
        %698 = vmatmul.mubr.f32.gmra.mrb[0].mxu0 %v535
        %v699 = vpop.f32.mrb[0].mxu0
        %v700 = vadd.f32 0.0, %v699
        %v701 = vpop.f32.mrb[0].mxu0
        %702 = vmatprep.mubr.f32.mxu0 0.0
        %703 = vmatmul.mubr.f32.gmra.mrb[0].mxu0 %v538
        %v704 = vpop.f32.mrb[0].mxu0
        %v705 = vadd.f32 0.0, %v704
        %v706 = vpop.f32.mrb[0].mxu0
        %707 = vmatprep.mubr.f32.mxu0 0.0
        %708 = vmatmul.mubr.f32.gmra.mrb[0].mxu0 %v541
        %v709 = vpop.f32.mrb[0].mxu0
        %v710 = vadd.f32 0.0, %v709
        %v711 = vpop.f32.mrb[0].mxu0
        %712 = vdwg.mxu0
        %713 = vmatprep.subr.mxu0 0.0
        %714 = vmatpush1.msra.mxu0 %v438
        %715 = vmatprep.subr.mxu0 0.0
        %716 = vmatpush1.msra.mxu0 %v443
        %717 = vmatprep.subr.mxu0 0.0
        %718 = vmatpush1.msra.mxu0 0.0
        %719 = vmatprep.subr.mxu0 0.0
        %720 = vmatpush1.msra.mxu0 0.0
        %721 = vmatprep.subr.mxu0 0.0
        %722 = vmatpush1.msra.mxu0 0.0
        %723 = vmatprep.subr.mxu0 0.0
        %724 = vmatpush1.msra.mxu0 0.0
        %725 = vmatprep.subr.mxu0 0.0
        %726 = vmatpush1.msra.mxu0 0.0
        %727 = vmatprep.subr.mxu0 0.0
        %728 = vmatpush1.msra.mxu0 0.0
        %729 = vmatprep.subr.mxu0 0.0
        %730 = vmatpush1.msra.mxu0 0.0
        %731 = vmatprep.subr.mxu0 0.0
        %732 = vmatpush1.msra.mxu0 0.0
        %733 = vmatprep.subr.mxu0 0.0
        %734 = vmatpush1.msra.mxu0 0.0
        %735 = vmatprep.subr.mxu0 0.0
        %736 = vmatpush1.msra.mxu0 0.0
        %737 = vmatprep.subr.mxu0 0.0
        %738 = vmatpush1.msra.mxu0 0.0
        %739 = vmatprep.subr.mxu0 0.0
        %740 = vmatpush1.msra.mxu0 0.0
        %741 = vmatprep.subr.mxu0 0.0
        %742 = vmatpush1.msra.mxu0 0.0
        %743 = vmatprep.subr.mxu0 0.0
        %744 = vmatpush1.msra.mxu0 0.0
        %745 = vmatprep.subr.mxu0 0.0
        %746 = vmatpush1.msra.mxu0 0.0
        %747 = vmatprep.subr.mxu0 0.0
        %748 = vmatpush1.msra.mxu0 0.0
        %749 = vmatprep.subr.mxu0 0.0
        %750 = vmatpush1.msra.mxu0 0.0
        %751 = vmatprep.subr.mxu0 0.0
        %752 = vmatpush1.msra.mxu0 0.0
        %753 = vmatprep.subr.mxu0 0.0
        %754 = vmatpush1.msra.mxu0 0.0
        %755 = vmatprep.subr.mxu0 0.0
        %756 = vmatpush1.msra.mxu0 0.0
        %757 = vmatprep.subr.mxu0 0.0
        %758 = vmatpush1.msra.mxu0 0.0
        %759 = vmatprep.subr.mxu0 0.0
        %760 = vmatpush1.msra.mxu0 0.0
        %761 = vmatprep.subr.mxu0 0.0
        %762 = vmatpush1.msra.mxu0 0.0
        %763 = vmatprep.subr.mxu0 0.0
        %764 = vmatpush1.msra.mxu0 0.0
        %765 = vmatprep.subr.mxu0 0.0
        %766 = vmatpush1.msra.mxu0 0.0
        %767 = vmatprep.subr.mxu0 0.0
        %768 = vmatpush1.msra.mxu0 0.0
        %769 = vmatprep.subr.mxu0 0.0
        %770 = vmatpush1.msra.mxu0 0.0
        %771 = vmatprep.subr.mxu0 0.0
        %772 = vmatpush1.msra.mxu0 0.0
        %773 = vmatprep.subr.mxu0 0.0
        %774 = vmatpush1.msra.mxu0 0.0
        %775 = vmatprep.subr.mxu0 0.0
        %776 = vmatpush1.msra.mxu0 0.0
        %777 = vmatprep.mubr.f32.mxu0 0.0
        %778 = vmatmul.mubr.f32.gmra.mrb[0].mxu0 %v532
        %v779 = vpop.f32.mrb[0].mxu0
        %v780 = vadd.f32 0.0, %v779
        %v781 = vpop.f32.mrb[0].mxu0
        %782 = vmatprep.mubr.f32.mxu0 0.0
        %783 = vmatmul.mubr.f32.gmra.mrb[0].mxu0 %v535
        %v784 = vpop.f32.mrb[0].mxu0
        %v785 = vadd.f32 0.0, %v784
        %v786 = vpop.f32.mrb[0].mxu0
        %787 = vmatprep.mubr.f32.mxu0 0.0
        %788 = vmatmul.mubr.f32.gmra.mrb[0].mxu0 %v538
        %v789 = vpop.f32.mrb[0].mxu0
        %v790 = vadd.f32 0.0, %v789
        %v791 = vpop.f32.mrb[0].mxu0
        %792 = vmatprep.mubr.f32.mxu0 0.0
        %793 = vmatmul.mubr.f32.gmra.mrb[0].mxu0 %v541
        %v794 = vpop.f32.mrb[0].mxu0
        %v795 = vadd.f32 0.0, %v794
        %v796 = vpop.f32.mrb[0].mxu0
        %797 = vdwg.mxu0
        %798 = vmatprep.subr.mxu0 0.0
        %799 = vmatpush1.msra.mxu0 %v519
        %800 = vmatprep.subr.mxu0 0.0
        %801 = vmatpush1.msra.mxu0 %v524
        %802 = vmatprep.subr.mxu0 0.0
        %803 = vmatpush1.msra.mxu0 0.0
        %804 = vmatprep.subr.mxu0 0.0
        %805 = vmatpush1.msra.mxu0 0.0
        %806 = vmatprep.subr.mxu0 0.0
        %807 = vmatpush1.msra.mxu0 0.0
        %808 = vmatprep.subr.mxu0 0.0
        %809 = vmatpush1.msra.mxu0 0.0
        %810 = vmatprep.subr.mxu0 0.0
        %811 = vmatpush1.msra.mxu0 0.0
        %812 = vmatprep.subr.mxu0 0.0
        %813 = vmatpush1.msra.mxu0 0.0
        %814 = vmatprep.subr.mxu0 0.0
        %815 = vmatpush1.msra.mxu0 0.0
        %816 = vmatprep.subr.mxu0 0.0
        %817 = vmatpush1.msra.mxu0 0.0
        %818 = vmatprep.subr.mxu0 0.0
        %819 = vmatpush1.msra.mxu0 0.0
        %820 = vmatprep.subr.mxu0 0.0
        %821 = vmatpush1.msra.mxu0 0.0
        %822 = vmatprep.subr.mxu0 0.0
        %823 = vmatpush1.msra.mxu0 0.0
        %824 = vmatprep.subr.mxu0 0.0
        %825 = vmatpush1.msra.mxu0 0.0
        %826 = vmatprep.subr.mxu0 0.0
        %827 = vmatpush1.msra.mxu0 0.0
        %828 = vmatprep.subr.mxu0 0.0
        %829 = vmatpush1.msra.mxu0 0.0
        %830 = vmatprep.subr.mxu0 0.0
        %831 = vmatpush1.msra.mxu0 0.0
        %832 = vmatprep.subr.mxu0 0.0
        %833 = vmatpush1.msra.mxu0 0.0
        %834 = vmatprep.subr.mxu0 0.0
        %835 = vmatpush1.msra.mxu0 0.0
        %836 = vmatprep.subr.mxu0 0.0
        %837 = vmatpush1.msra.mxu0 0.0
        %838 = vmatprep.subr.mxu0 0.0
        %839 = vmatpush1.msra.mxu0 0.0
        %840 = vmatprep.subr.mxu0 0.0
        %841 = vmatpush1.msra.mxu0 0.0
        %842 = vmatprep.subr.mxu0 0.0
        %843 = vmatpush1.msra.mxu0 0.0
        %844 = vmatprep.subr.mxu0 0.0
        %845 = vmatpush1.msra.mxu0 0.0
        %846 = vmatprep.subr.mxu0 0.0
        %847 = vmatpush1.msra.mxu0 0.0
        %848 = vmatprep.subr.mxu0 0.0
        %849 = vmatpush1.msra.mxu0 0.0
        %850 = vmatprep.subr.mxu0 0.0
        %851 = vmatpush1.msra.mxu0 0.0
        %852 = vmatprep.subr.mxu0 0.0
        %853 = vmatpush1.msra.mxu0 0.0
        %854 = vmatprep.subr.mxu0 0.0
        %855 = vmatpush1.msra.mxu0 0.0
        %856 = vmatprep.subr.mxu0 0.0
        %857 = vmatpush1.msra.mxu0 0.0
        %858 = vmatprep.subr.mxu0 0.0
        %859 = vmatpush1.msra.mxu0 0.0
        %860 = vmatprep.subr.mxu0 0.0
        %861 = vmatpush1.msra.mxu0 0.0
        %862 = vmatprep.mubr.f32.mxu0 0.0
        %863 = vmatmul.mubr.f32.gmra.mrb[0].mxu0 %v532
        %v864 = vpop.f32.mrb[0].mxu0
        %v865 = vadd.f32 0.0, %v864
        %v866 = vpop.f32.mrb[0].mxu0
        %867 = vmatprep.mubr.f32.mxu0 0.0
        %868 = vmatmul.mubr.f32.gmra.mrb[0].mxu0 %v535
        %v869 = vpop.f32.mrb[0].mxu0
        %v870 = vadd.f32 0.0, %v869
        %v871 = vpop.f32.mrb[0].mxu0
        %872 = vmatprep.mubr.f32.mxu0 0.0
        %873 = vmatmul.mubr.f32.gmra.mrb[0].mxu0 %v538
        %v874 = vpop.f32.mrb[0].mxu0
        %v875 = vadd.f32 0.0, %v874
        %v876 = vpop.f32.mrb[0].mxu0
        %877 = vmatprep.mubr.f32.mxu0 0.0
        %878 = vmatmul.mubr.f32.gmra.mrb[0].mxu0 %v541
        %v879 = vpop.f32.mrb[0].mxu0
        %v880 = vadd.f32 0.0, %v879
        %v881 = vpop.f32.mrb[0].mxu0
        %882 = vdwg.mxu0
        %vm883 = vcmask 261120
        %884 = vst.msk [vmem:[%s189] sm:$0xff] %vm883, %v610
        %885 = vst.msk [vmem:[%s189 + $0x8] sm:$0xff] %vm883, %v615
        %886 = vst.msk [vmem:[%s189 + $0x10] sm:$0xff] %vm883, %v620
        %887 = vst.msk [vmem:[%s189 + $0x18] sm:$0xff] %vm883, %v625
        %888 = vst.msk [vmem:[%s189 + $0x20] sm:$0xff] %vm883, %v695
        %889 = vst.msk [vmem:[%s189 + $0x28] sm:$0xff] %vm883, %v700
        %890 = vst.msk [vmem:[%s189 + $0x30] sm:$0xff] %vm883, %v705
        %891 = vst.msk [vmem:[%s189 + $0x38] sm:$0xff] %vm883, %v710
        %892 = vst.msk [vmem:[%s189 + $0x40] sm:$0xff] %vm883, %v780
        %893 = vst.msk [vmem:[%s189 + $0x48] sm:$0xff] %vm883, %v785
        %894 = vst.msk [vmem:[%s189 + $0x50] sm:$0xff] %vm883, %v790
        %895 = vst.msk [vmem:[%s189 + $0x58] sm:$0xff] %vm883, %v795
        %896 = vst.msk [vmem:[%s189 + $0x60] sm:$0xff] %vm883, %v865
        %897 = vst.msk [vmem:[%s189 + $0x68] sm:$0xff] %vm883, %v870
        %898 = vst.msk [vmem:[%s189 + $0x70] sm:$0xff] %vm883, %v875
        %899 = vst.msk [vmem:[%s189 + $0x78] sm:$0xff] %vm883, %v880
        %s900 = sand.u32 %s96, 1
        %s901 = scalar_lea.sflag [#allocation4], %s900
        %s902 = sand.u32 %s96, 1
        %s903 = smul.addr %s902, 128
        %s904 = scalar_lea.vmem [#allocation5], %s903
        // Predicated region
        $region37: #{tpu_custom_call.1} parent=31 // pred_check
          %p905 = pneg %p106
        $region38: #{tpu_custom_call.1} parent=31 // pred_check_branch
          %907 = sbr.rel (%p905) target = $region40
        $region39: #{tpu_custom_call.1} parent=31 // pred_region
          %s908 = smul.u32 4, %s20
          %s910 = ssub.s32 2048, 2048
          %911 = vsyncadd %s901, %s910
          %s912 = smul.addr %s908, 4
          %s913 = smul.addr %s912, 128
          %s914 = scalar_lea.hbm %s3, %s913
          %s915 = sshll.u32 %s904, 4
          %s916 = int_to_ptr.vmem [resolvable:$true] %s915
          %921 = dma.vmem_to_hbm [thread:$0]  %s916, 2048, %s914, %s901, 128, 128, 8
        $region40: #{tpu_custom_call.1} parent=31 // pred_fallthru
          _
      $region32: #{tpu_custom_call.1} parent=5 // pred_fallthru
        _
      %p922 = scmp.le.s32.totalorder 2, %s15
      // Predicated region
      $region41: #{tpu_custom_call.1} parent=5 // pred_check
        %p923 = pneg %p922
      $region42: #{tpu_custom_call.1} parent=5 // pred_check_branch
        %925 = sbr.rel (%p923) target = $region44
      $region43: #{tpu_custom_call.1} parent=5 // pred_region
        %s926 = ssub.s32 %s15, 2
        // Predicated region
        $region45: #{tpu_custom_call.1} parent=43 // pred_check
          %p927 = pneg %p112
        $region46: #{tpu_custom_call.1} parent=43 // pred_check_branch
          %929 = sbr.rel (%p927) target = $region48
        $region47: #{tpu_custom_call.1} parent=43 // pred_region
          %s930 = sand.u32 %s97, 1
          %s931 = scalar_lea.sflag [#allocation4], %s930
          %s932 = sand.u32 %s97, 1
          %s933 = smul.addr %s932, 128
          %s934 = scalar_lea.vmem [#allocation5], %s933
          %935 = dma.done %s931, 2048
        $region48: #{tpu_custom_call.1} parent=43 // pred_fallthru
          _
      $region44: #{tpu_custom_call.1} parent=5 // pred_fallthru
        _
    $region6: #{tpu_custom_call.1} parent=1 // loop_footer
      %s19 = sadd.s32 1, %s15
    $region7: #{tpu_custom_call.1} parent=1 // loop_footer_branch
      %14 = sbr.rel target = $region3
    $region8: #{tpu_custom_call.1} parent=1 // loop_exit
      _
    %936 = vsyncpa [#allocation3], 1
    %s937 = scalar_lea.sflag [#allocation3], 1
    %938 = vsyncpa %s937, 1
    %939 = vsyncpa [#allocation4], 1
    %s940 = scalar_lea.sflag [#allocation4], 1
    %941 = vsyncpa %s940, 1

</llo_original>
